<compile_context>
chip_gen: v6e
topology: v6e:2x2x1
jax: 0.10.0
libtpu: 0.0.40
codegen_flags: <defaults>
</compile_context>

<pallas_src>
import math
from typing import NamedTuple

import jax
import jax.numpy as jnp
from jax.experimental import pallas as pl
from jax.experimental.pallas import tpu as pltpu


_TILE_B_PREFS = (512, 256, 128, 64, 32, 16, 8)   # batch tile (sublane axis)
_TILE_H_PREFS = (512, 256, 128)                  # hidden tile (lane axis)


def _round_up(x, m):
    return ((x + m - 1) // m) * m


def _pick_tile(dim, prefs):
    for p in prefs:
        if p <= dim and dim % p == 0:
            return p
    return dim


def _vmem_capacity_bytes():
    try:
        return int(pltpu.get_tpu_info().vmem_capacity_bytes)
    except Exception:
        return 64 * 1024 * 1024        # conservative default (v7x per-core VMEM)


def _nbytes(shape, dtype):
    return math.prod(shape) * jnp.dtype(dtype).itemsize


def _sigmoid(x):
    # sigmoid(x) = 0.5 * tanh(0.5*x) + 0.5  -> 1 EUP op + 2 VPU ops (vs exp+recip).
    return 0.5 * jnp.tanh(0.5 * x) + 0.5


class LSTMParams(NamedTuple):
    w_x: jax.Array        # [D_in,  4*H_pad]  compute dtype, hidden-tile-major columns
    w_h: jax.Array        # [H_pad, 4*H_pad]  compute dtype, hidden-tile-major columns
    b: jax.Array          # [1,     4*H_pad]  float32, same column order
    input_size: int
    hidden_size: int
    hidden_pad: int
    tile_h: int


def prepare_lstm_params(wx, bx, wh, bh, compute_dtype=jnp.bfloat16, tile_h=None):
    """One-time parameter prep.  Call ONCE, outside the recurrent time loop.

    wx: [4H, D_in], bx: [4H], wh: [4H, H], bh: [4H]  (PyTorch nn.Linear layout,
    gate order i|f|c|o).  H is zero-padded to a multiple of 128 so every gate
    slice / output slab is lane-aligned; padded columns contribute exactly 0.
    """
    four_h, d_in = wx.shape
    H = four_h // 4
    H_pad = _round_up(max(H, 128), 128)

    if tile_h is None:
        w_bytes = (d_in + H_pad) * 4 * H_pad * jnp.dtype(compute_dtype).itemsize
        if w_bytes <= _vmem_capacity_bytes() // 3:
            tile_h = H_pad                      # full-width tiles -> time fusion possible
        else:
            tile_h = _pick_tile(H_pad, _TILE_H_PREFS)
    assert H_pad % tile_h == 0, "tile_h must divide padded hidden size"
    n_ht = H_pad // tile_h

    def reorder_cols(w):
        # [..., 4*H] -> pad each gate to H_pad -> hidden-tile-major [..., 4*H_pad]:
        # the 4*tile_h block for hidden tile j holds its i|f|c|o columns contiguously.
        lead = w.shape[:-1]
        w = w.reshape(*lead, 4, H)
        w = jnp.pad(w, [(0, 0)] * len(lead) + [(0, 0), (0, H_pad - H)])
        w = w.reshape(*lead, 4, n_ht, tile_h)
        w = jnp.moveaxis(w, -3, -2)             # [..., n_ht, 4, tile_h]
        return w.reshape(*lead, 4 * H_pad)

    w_x = reorder_cols(jnp.transpose(wx).astype(jnp.float32))       # [D_in, 4*H_pad]
    w_h = reorder_cols(jnp.transpose(wh).astype(jnp.float32))       # [H,    4*H_pad]
    w_h = jnp.pad(w_h, ((0, H_pad - H), (0, 0)))                    # pad K rows with 0
    b_row = reorder_cols((bx + bh).astype(jnp.float32)[None, :])    # [1, 4*H_pad]

    return LSTMParams(w_x.astype(compute_dtype), w_h.astype(compute_dtype), b_row,
                      int(d_in), int(H), int(H_pad), int(tile_h))


# ---------------------------------------------------------------------------
# Single-step kernel (matches LSTMCell.forward exactly, tiled over B and H).
# ---------------------------------------------------------------------------

def _lstm_cell_kernel(x_ref, h_ref, cx_ref, wx_ref, wh_ref, b_ref, hy_ref, cy_ref):
    # Two MXU dots (bf16 operands, f32 accumulate) into one f32 gates tile.
    gates = jnp.dot(x_ref[...], wx_ref[...], preferred_element_type=jnp.float32)
    gates = gates + jnp.dot(h_ref[...], wh_ref[...], preferred_element_type=jnp.float32)
    gates = gates + b_ref[...]

    th = hy_ref.shape[-1]                       # multiple of 128 -> lane-aligned slices
    i_g = _sigmoid(gates[:, 0 * th:1 * th])
    f_g = _sigmoid(gates[:, 1 * th:2 * th])
    c_g = jnp.tanh(gates[:, 2 * th:3 * th])
    o_g = _sigmoid(gates[:, 3 * th:4 * th])

    cy = cx_ref[...] * f_g + i_g * c_g          # cell state in f32 end-to-end
    hy = o_g * jnp.tanh(cy)

    hy_ref[...] = hy.astype(hy_ref.dtype)       # bf16 (next step's MXU operand)
    cy_ref[...] = cy.astype(cy_ref.dtype)       # f32


def lstm_cell_forward(x, hx, cx, params: LSTMParams):
    """One LSTMCell step.  x: [B, D_in], hx/cx: [B, H].
    Returns (hy: [B, H] compute dtype, cy: [B, H] float32)."""
    B, D_in = x.shape
    H, H_pad, tile_h = params.hidden_size, params.hidden_pad, params.tile_h
    assert D_in == params.input_size and hx.shape == (B, H) and cx.shape == (B, H)

    cdt = params.w_x.dtype
    B_pad = _round_up(B, 8)                     # sublane alignment; pad B to >=128 for
    tile_b = _pick_tile(B_pad, _TILE_B_PREFS)   # best v5e MXU utilization in production
    n_bt, n_ht = B_pad // tile_b, H_pad // tile_h

    def pad2(a, rows, cols, dtype):
        a = a.astype(dtype)
        if a.shape == (rows, cols):
            return a
        return jnp.pad(a, ((0, rows - a.shape[0]), (0, cols - a.shape[1])))

    # Per-step glue touches activations only; NO [x, hx] concat materialized.
    x_p = pad2(x, B_pad, D_in, cdt)
    h_p = pad2(hx, B_pad, H_pad, cdt)
    cx_p = pad2(cx, B_pad, H_pad, jnp.float32)

    # Hidden/weight axis outer only when it has >=2 blocks (weight tile resident
    # while batch streams); otherwise batch outer so both v7x cores get work.
    if n_ht >= 2:
        grid = (n_ht, n_bt)
        x_map = lambda j, i: (i, 0)
        cx_map = lambda j, i: (i, j)
        w_map = lambda j, i: (0, j)
    else:
        grid = (n_bt, n_ht)
        x_map = lambda i, j: (i, 0)
        cx_map = lambda i, j: (i, j)
        w_map = lambda i, j: (0, j)

    # Footprint-derived VMEM limit (double-buffered blocks), not a blanket cap.
    # TODO(synk): add an innermost "arbitrary" K grid axis + f32 VMEM accumulator
    # for very large D_in+H so block footprints stay bounded on v7x (64 MiB VMEM).
    foot = 2 * (_nbytes((tile_b, D_in), cdt) + _nbytes((tile_b, H_pad), cdt)
                + _nbytes((tile_b, tile_h), jnp.float32)
                + _nbytes((D_in, 4 * tile_h), cdt) + _nbytes((H_pad, 4 * tile_h), cdt)
                + _nbytes((1, 4 * tile_h), jnp.float32)
                + _nbytes((tile_b, tile_h), cdt) + _nbytes((tile_b, tile_h), jnp.float32))
    vmem_limit = min(max(int(1.5 * foot) + (4 << 20), 32 << 20), 100 << 20)

    out_spec = pl.BlockSpec((tile_b, tile_h), cx_map)
    hy, cy = pl.pallas_call(
        _lstm_cell_kernel,
        out_shape=(jax.ShapeDtypeStruct((B_pad, H_pad), cdt),
                   jax.ShapeDtypeStruct((B_pad, H_pad), jnp.float32)),
        grid=grid,
        in_specs=[
            pl.BlockSpec((tile_b, D_in), x_map),          # x   (streams)
            pl.BlockSpec((tile_b, H_pad), x_map),         # hx  (streams)
            pl.BlockSpec((tile_b, tile_h), cx_map),       # cx
            pl.BlockSpec((D_in, 4 * tile_h), w_map),      # w_x (resident over batch)
            pl.BlockSpec((H_pad, 4 * tile_h), w_map),     # w_h (resident over batch)
            pl.BlockSpec((1, 4 * tile_h), w_map),         # bias row
        ],
        out_specs=(out_spec, out_spec),
        input_output_aliases={2: 1},      # cx (input 2) -> cy (output 1), in-place state
        compiler_params=pltpu.CompilerParams(
            dimension_semantics=("parallel", "parallel"),
            vmem_limit_bytes=vmem_limit),
    )(x_p, h_p, cx_p, params.w_x, params.w_h, params.b)

    if (B_pad, H_pad) != (B, H):
        hy, cy = hy[:B, :H], cy[:B, :H]
    return hy, cy


# ---------------------------------------------------------------------------
# Time-fused sequence kernel: weights DMA'd once & VMEM-resident, h/c carried
# in VMEM scratch, only x_t streamed in and h_t streamed out.
# ---------------------------------------------------------------------------

def _lstm_seq_kernel(x_ref, h0_ref, c0_ref, wx_ref, wh_ref, b_ref,
                     hseq_ref, cy_ref, h_scr, c_scr):
    t = pl.program_id(0)

    @pl.when(t == 0)
    def _():
        h_scr[...] = h0_ref[...]
        c_scr[...] = c0_ref[...]

    H = h_scr.shape[-1]
    gates = jnp.dot(x_ref[0], wx_ref[...], preferred_element_type=jnp.float32)
    gates = gates + jnp.dot(h_scr[...], wh_ref[...], preferred_element_type=jnp.float32)
    gates = gates + b_ref[...]

    i_g = _sigmoid(gates[:, 0 * H:1 * H])
    f_g = _sigmoid(gates[:, 1 * H:2 * H])
    c_g = jnp.tanh(gates[:, 2 * H:3 * H])
    o_g = _sigmoid(gates[:, 3 * H:4 * H])

    cy = c_scr[...] * f_g + i_g * c_g
    hy = o_g * jnp.tanh(cy)

    c_scr[...] = cy
    h_scr[...] = hy.astype(h_scr.dtype)
    hseq_ref[0] = hy.astype(hseq_ref.dtype)

    @pl.when(t == pl.num_programs(0) - 1)
    def _():
        cy_ref[...] = cy.astype(cy_ref.dtype)


def lstm_sequence_forward(x_seq, h0, c0, params: LSTMParams):
    """Apply the cell over x_seq: [T, B, D_in] with the time loop fused into a
    single pallas_call.  Returns (h_seq: [T, B, H], hy: [B, H], cy: [B, H])."""
    T, B, D_in = x_seq.shape
    H, H_pad = params.hidden_size, params.hidden_pad
    cdt = params.w_x.dtype
    B_pad = _round_up(B, 8)

    est = (2 * (_nbytes((D_in, 4 * H_pad), cdt) + _nbytes((H_pad, 4 * H_pad), cdt)
                + _nbytes((1, 4 * H_pad), jnp.float32)
                + _nbytes((B_pad, H_pad), cdt) + _nbytes((B_pad, H_pad), jnp.float32)
                + _nbytes((1, B_pad, D_in), cdt) + _nbytes((1, B_pad, H_pad), cdt)
                + _nbytes((B_pad, H_pad), jnp.float32))
           + _nbytes((B_pad, H_pad), cdt) + _nbytes((B_pad, H_pad), jnp.float32))

    if params.tile_h != H_pad or est > int(0.75 * _vmem_capacity_bytes()):
        # Weights can't stay fully resident (e.g. huge H on v7x's 64 MiB VMEM):
        # fall back to a scan of the tiled single-step kernel.
        # TODO(synk): in-kernel hidden-tile loop keeping per-tile weight slabs resident.
        def step(carry, x_t):
            h, c = carry
            hy, cy = lstm_cell_forward(x_t, h, c, params)
            return (hy, cy), hy
        (hy, cy), h_seq = jax.lax.scan(step, (h0.astype(cdt), c0.astype(jnp.float32)),
                                       x_seq)
        return h_seq, hy, cy

    def pad2(a, rows, cols, dtype):
        a = a.astype(dtype)
        if a.shape[-2:] == (rows, cols):
            return a
        pad = [(0, 0)] * (a.ndim - 2) + [(0, rows - a.shape[-2]), (0, cols - a.shape[-1])]
        return jnp.pad(a, pad)

    x_p = pad2(x_seq, B_pad, D_in, cdt)          # one-time cast/pad, outside the loop
    h0_p = pad2(h0, B_pad, H_pad, cdt)
    c0_p = pad2(c0, B_pad, H_pad, jnp.float32)

    vmem_limit = min(max(int(1.3 * est) + (8 << 20), 32 << 20), 100 << 20)

    h_seq, cy = pl.pallas_call(
        _lstm_seq_kernel,
        out_shape=(jax.ShapeDtypeStruct((T, B_pad, H_pad), cdt),
                   jax.ShapeDtypeStruct((B_pad, H_pad), jnp.float32)),
        grid=(T,),
        in_specs=[
            pl.BlockSpec((1, B_pad, D_in), lambda t: (t, 0, 0)),   # x_t streams
            pl.BlockSpec((B_pad, H_pad), lambda t: (0, 0)),        # h0 (read at t=0)
            pl.BlockSpec((B_pad, H_pad), lambda t: (0, 0)),        # c0 (read at t=0)
            pl.BlockSpec((D_in, 4 * H_pad), lambda t: (0, 0)),     # w_x resident (DMA'd once)
            pl.BlockSpec((H_pad, 4 * H_pad), lambda t: (0, 0)),    # w_h resident (DMA'd once)
            pl.BlockSpec((1, 4 * H_pad), lambda t: (0, 0)),        # bias resident
        ],
        out_specs=(pl.BlockSpec((1, B_pad, H_pad), lambda t: (t, 0, 0)),
                   pl.BlockSpec((B_pad, H_pad), lambda t: (0, 0))),
        scratch_shapes=[pltpu.VMEM((B_pad, H_pad), cdt),           # h carry
                        pltpu.VMEM((B_pad, H_pad), jnp.float32)],  # c carry
        compiler_params=pltpu.CompilerParams(
            dimension_semantics=("arbitrary",),
            vmem_limit_bytes=vmem_limit),
    )(x_p, h0_p, c0_p, params.w_x, params.w_h, params.b)

    if (B_pad, H_pad) != (B, H):
        h_seq = h_seq[:, :B, :H]
        cy = cy[:B, :H]
    return h_seq, h_seq[-1], cy


# ---------------------------------------------------------------------------
# Pure-JAX references + self-test.
# ---------------------------------------------------------------------------

def lstm_cell_reference(x, hx, cx, wx, bx, wh, bh, compute_dtype=jnp.float32):
    """compute_dtype=f32 reproduces the PyTorch module; bf16 matches MXU numerics."""
    H = hx.shape[1]
    xh = jnp.concatenate([x, hx], axis=1).astype(compute_dtype)
    w = jnp.concatenate([jnp.transpose(wx), jnp.transpose(wh)], axis=0).astype(compute_dtype)
    gates = jnp.dot(xh, w, preferred_element_type=jnp.float32) + (bx + bh).astype(jnp.float32)
    i_g = jax.nn.sigmoid(gates[:, 0 * H:1 * H])
    f_g = jax.nn.sigmoid(gates[:, 1 * H:2 * H])
    c_g = jnp.tanh(gates[:, 2 * H:3 * H])
    o_g = jax.nn.sigmoid(gates[:, 3 * H:4 * H])
    cy = cx.astype(jnp.float32) * f_g + i_g * c_g
    hy = o_g * jnp.tanh(cy)
    return hy, cy


def lstm_sequence_reference(x_seq, h0, c0, wx, bx, wh, bh, compute_dtype=jnp.float32):
    h, c = h0, c0
    hs = []
    for t in range(x_seq.shape[0]):
        h, c = lstm_cell_reference(x_seq[t], h.astype(compute_dtype), c,
                                   wx, bx, wh, bh, compute_dtype)
        hs.append(h)
    return jnp.stack(hs), h, c


def _make_weights(key, D_in, H, dtype=jnp.float32):
    k1, k2, k3, k4 = jax.random.split(key, 4)
    std = 1.0 / math.sqrt(H)                    # matches reset_parameters()
    wx = jax.random.uniform(k1, (4 * H, D_in), dtype, -std, std)
    bx = jax.random.uniform(k2, (4 * H,), dtype, -std, std)
    wh = jax.random.uniform(k3, (4 * H, H), dtype, -std, std)
    bh = jax.random.uniform(k4, (4 * H,), dtype, -std, std)
    return wx, bx, wh, bh


def _check(name, got, want, atol, rtol):
    g = got.astype(jnp.float32)
    w = want.astype(jnp.float32)
    ok = bool(jnp.allclose(g, w, atol=atol, rtol=rtol))
    assert ok, f"{name} mismatch (max abs err {float(jnp.max(jnp.abs(g - w))):.3e})"


def _run_cell_case(key, B, D_in, H, tile_h=None):
    kp, kx, kh, kc = jax.random.split(key, 4)
    wx, bx, wh, bh = _make_weights(kp, D_in, H)
    x = jax.random.normal(kx, (B, D_in), jnp.float32)
    hx = jax.random.normal(kh, (B, H), jnp.float32)
    cx = jax.random.normal(kc, (B, H), jnp.float32)

    params = prepare_lstm_params(wx, bx, wh, bh, tile_h=tile_h)   # ONCE, outside loop
    hy, cy = lstm_cell_forward(x, hx, cx, params)
    jax.block_until_ready((hy, cy))

    hy_n, cy_n = lstm_cell_reference(x, hx, cx, wx, bx, wh, bh, compute_dtype=jnp.bfloat16)
    _check("hy (bf16 ref)", hy, hy_n, 1e-2, 1e-2)
    _check("cy (bf16 ref)", cy, cy_n, 5e-3, 5e-3)

    hy_f, cy_f = lstm_cell_reference(x, hx, cx, wx, bx, wh, bh)
    _check("hy (f32 ref)", hy, hy_f, 5e-2, 5e-2)
    _check("cy (f32 ref)", cy, cy_f, 5e-2, 5e-2)


def _run_seq_case(key, T, B, D_in, H):
    kp, kx, kh, kc = jax.random.split(key, 4)
    wx, bx, wh, bh = _make_weights(kp, D_in, H)
    x_seq = jax.random.normal(kx, (T, B, D_in), jnp.float32)
    h0 = jax.random.normal(kh, (B, H), jnp.float32)
    c0 = jax.random.normal(kc, (B, H), jnp.float32)

    params = prepare_lstm_params(wx, bx, wh, bh)
    h_seq, hy, cy = lstm_sequence_forward(x_seq, h0, c0, params)
    jax.block_until_ready((h_seq, hy, cy))

    hs_n, _, cy_n = lstm_sequence_reference(x_seq, h0, c0, wx, bx, wh, bh,
                                            compute_dtype=jnp.bfloat16)
    _check("h_seq (bf16 ref)", h_seq, hs_n, 2e-2, 2e-2)
    _check("cy_seq (bf16 ref)", cy, cy_n, 2e-2, 2e-2)

    hs_f, _, _ = lstm_sequence_reference(x_seq, h0, c0, wx, bx, wh, bh)
    _check("h_seq (f32 ref)", h_seq, hs_f, 1e-1, 1e-1)


if __name__ == "__main__":
    key = jax.random.PRNGKey(0)
    k1, k2, k3, k4 = jax.random.split(key, 4)

    # Small shapes consistent with the module's forward (H zero-padded to 128).
    _run_cell_case(k1, B=8, D_in=16, H=32)
    # Lane-dense 128-multiple hidden / batch, single resident weight block.
    _run_cell_case(k2, B=256, D_in=128, H=256)
    # Force hidden tiling (n_ht=2): exercises the hidden-tile-major column
    # reorder and the hidden-outer "parallel" grid ordering.
    _run_cell_case(k3, B=128, D_in=64, H=256, tile_h=128)
    # Time-fused sequence: weights DMA'd once, h/c carried in VMEM across steps.
    _run_seq_case(k4, T=8, B=8, D_in=16, H=32)

    print("KERNEL_OK")
</pallas_src>

<mosaic_0001>
module attributes {stable_mosaic.version = 11 : i64} {
  func.func @_lstm_cell_kernel(%arg0: i32, %arg1: i32, %arg2: memref<8x16xbf16, #tpu.memory_space<vmem>>, %arg3: memref<8x128xbf16, #tpu.memory_space<vmem>>, %arg4: memref<8x128xf32, #tpu.memory_space<vmem>>, %arg5: memref<16x512xbf16, #tpu.memory_space<vmem>>, %arg6: memref<128x512xbf16, #tpu.memory_space<vmem>>, %arg7: memref<1x512xf32, #tpu.memory_space<vmem>>, %arg8: memref<8x128xbf16, #tpu.memory_space<vmem>>, %arg9: memref<8x128xf32, #tpu.memory_space<vmem>>) attributes {dimension_semantics = [#tpu.dimension_semantics<parallel>, #tpu.dimension_semantics<parallel>], iteration_bounds = array<i64: 1, 1>, scalar_prefetch = 0 : i64, scratch_operands = 0 : i64, tpu.core_type = #tpu.core_type<tc>, window_params = [{transform_indices = @transform_0, window_bounds = array<i64: 8, 16>}, {transform_indices = @transform_1, window_bounds = array<i64: 8, 128>}, {transform_indices = @transform_2, window_bounds = array<i64: 8, 128>}, {transform_indices = @transform_3, window_bounds = array<i64: 16, 512>}, {transform_indices = @transform_4, window_bounds = array<i64: 128, 512>}, {transform_indices = @transform_5, window_bounds = array<i64: 1, 512>}, {transform_indices = @transform_6, window_bounds = array<i64: 8, 128>}, {transform_indices = @transform_7, window_bounds = array<i64: 8, 128>}]} {
    %c0 = arith.constant 0 : index
    %c0_0 = arith.constant 0 : index
    %0 = vector.load %arg2[%c0, %c0_0] : memref<8x16xbf16, #tpu.memory_space<vmem>>, vector<8x16xbf16>
    %c0_1 = arith.constant 0 : index
    %c0_2 = arith.constant 0 : index
    %1 = vector.load %arg5[%c0_1, %c0_2] : memref<16x512xbf16, #tpu.memory_space<vmem>>, vector<16x512xbf16>
    %cst = arith.constant dense<0.000000e+00> : vector<8x512xf32>
    %2 = tpu.matmul %0, %1, %cst {dimension_numbers = #tpu.dot_dimension_numbers<[1], [0], [0], [1], [0, 0, 1, 1], [], []>} : vector<8x16xbf16>, vector<16x512xbf16>, vector<8x512xf32> -> vector<8x512xf32>
    %c0_3 = arith.constant 0 : index
    %c0_4 = arith.constant 0 : index
    %3 = vector.load %arg3[%c0_3, %c0_4] : memref<8x128xbf16, #tpu.memory_space<vmem>>, vector<8x128xbf16>
    %c0_5 = arith.constant 0 : index
    %c0_6 = arith.constant 0 : index
    %4 = vector.load %arg6[%c0_5, %c0_6] : memref<128x512xbf16, #tpu.memory_space<vmem>>, vector<128x512xbf16>
    %cst_7 = arith.constant dense<0.000000e+00> : vector<8x512xf32>
    %5 = tpu.matmul %3, %4, %cst_7 {dimension_numbers = #tpu.dot_dimension_numbers<[1], [0], [0], [1], [0, 0, 1, 1], [], []>} : vector<8x128xbf16>, vector<128x512xbf16>, vector<8x512xf32> -> vector<8x512xf32>
    %6 = arith.addf %2, %5 : vector<8x512xf32>
    %c0_8 = arith.constant 0 : index
    %c0_9 = arith.constant 0 : index
    %7 = vector.load %arg7[%c0_8, %c0_9] : memref<1x512xf32, #tpu.memory_space<vmem>>, vector<1x512xf32>
    %8 = vector.broadcast %7 : vector<1x512xf32> to vector<8x512xf32>
    %9 = arith.addf %6, %8 : vector<8x512xf32>
    %10 = vector.extract_strided_slice %9 {offsets = [0, 0], sizes = [8, 128], strides = [1, 1]} : vector<8x512xf32> to vector<8x128xf32>
    %cst_10 = arith.constant 5.000000e-01 : f32
    %11 = vector.broadcast %cst_10 : f32 to vector<8x128xf32>
    %12 = arith.mulf %11, %10 : vector<8x128xf32>
    %13 = math.tanh %12 : vector<8x128xf32>
    %cst_11 = arith.constant 5.000000e-01 : f32
    %14 = vector.broadcast %cst_11 : f32 to vector<8x128xf32>
    %15 = arith.mulf %14, %13 : vector<8x128xf32>
    %cst_12 = arith.constant 5.000000e-01 : f32
    %16 = vector.broadcast %cst_12 : f32 to vector<8x128xf32>
    %17 = arith.addf %15, %16 : vector<8x128xf32>
    %18 = vector.extract_strided_slice %9 {offsets = [0, 128], sizes = [8, 128], strides = [1, 1]} : vector<8x512xf32> to vector<8x128xf32>
    %cst_13 = arith.constant 5.000000e-01 : f32
    %19 = vector.broadcast %cst_13 : f32 to vector<8x128xf32>
    %20 = arith.mulf %19, %18 : vector<8x128xf32>
    %21 = math.tanh %20 : vector<8x128xf32>
    %cst_14 = arith.constant 5.000000e-01 : f32
    %22 = vector.broadcast %cst_14 : f32 to vector<8x128xf32>
    %23 = arith.mulf %22, %21 : vector<8x128xf32>
    %cst_15 = arith.constant 5.000000e-01 : f32
    %24 = vector.broadcast %cst_15 : f32 to vector<8x128xf32>
    %25 = arith.addf %23, %24 : vector<8x128xf32>
    %26 = vector.extract_strided_slice %9 {offsets = [0, 256], sizes = [8, 128], strides = [1, 1]} : vector<8x512xf32> to vector<8x128xf32>
    %27 = math.tanh %26 : vector<8x128xf32>
    %28 = vector.extract_strided_slice %9 {offsets = [0, 384], sizes = [8, 128], strides = [1, 1]} : vector<8x512xf32> to vector<8x128xf32>
    %cst_16 = arith.constant 5.000000e-01 : f32
    %29 = vector.broadcast %cst_16 : f32 to vector<8x128xf32>
    %30 = arith.mulf %29, %28 : vector<8x128xf32>
    %31 = math.tanh %30 : vector<8x128xf32>
    %cst_17 = arith.constant 5.000000e-01 : f32
    %32 = vector.broadcast %cst_17 : f32 to vector<8x128xf32>
    %33 = arith.mulf %32, %31 : vector<8x128xf32>
    %cst_18 = arith.constant 5.000000e-01 : f32
    %34 = vector.broadcast %cst_18 : f32 to vector<8x128xf32>
    %35 = arith.addf %33, %34 : vector<8x128xf32>
    %c0_19 = arith.constant 0 : index
    %c0_20 = arith.constant 0 : index
    %36 = vector.load %arg4[%c0_19, %c0_20] : memref<8x128xf32, #tpu.memory_space<vmem>>, vector<8x128xf32>
    %37 = arith.mulf %36, %25 : vector<8x128xf32>
    %38 = arith.mulf %17, %27 : vector<8x128xf32>
    %39 = arith.addf %37, %38 : vector<8x128xf32>
    %40 = math.tanh %39 : vector<8x128xf32>
    %41 = arith.mulf %35, %40 : vector<8x128xf32>
    %42 = arith.truncf %41 : vector<8x128xf32> to vector<8x128xbf16>
    %c0_21 = arith.constant 0 : index
    %c0_22 = arith.constant 0 : index
    %43 = vector.load %arg8[%c0_21, %c0_22] : memref<8x128xbf16, #tpu.memory_space<vmem>>, vector<8x128xbf16>
    tpu.vector_store %arg8[%c0_21, %c0_22], %42 {strides = array<i32>} : memref<8x128xbf16, #tpu.memory_space<vmem>>, vector<8x128xbf16>,
    %c0_23 = arith.constant 0 : index
    %c0_24 = arith.constant 0 : index
    %44 = vector.load %arg9[%c0_23, %c0_24] : memref<8x128xf32, #tpu.memory_space<vmem>>, vector<8x128xf32>
    tpu.vector_store %arg9[%c0_23, %c0_24], %39 {strides = array<i32>} : memref<8x128xf32, #tpu.memory_space<vmem>>, vector<8x128xf32>,
    return
  }
  func.func @transform_0(%arg0: i32, %arg1: i32) -> (i32, i32) {
    %c0_i32 = arith.constant 0 : i32
    %c0_i32_0 = arith.constant 0 : i32
    return %arg0, %c0_i32 : i32, i32
  }
  func.func @transform_1(%arg0: i32, %arg1: i32) -> (i32, i32) {
    %c0_i32 = arith.constant 0 : i32
    %c0_i32_0 = arith.constant 0 : i32
    return %arg0, %c0_i32 : i32, i32
  }
  func.func @transform_2(%arg0: i32, %arg1: i32) -> (i32, i32) {
    %c0_i32 = arith.constant 0 : i32
    return %arg0, %arg1 : i32, i32
  }
  func.func @transform_3(%arg0: i32, %arg1: i32) -> (i32, i32) {
    %c0_i32 = arith.constant 0 : i32
    %c0_i32_0 = arith.constant 0 : i32
    return %c0_i32, %arg1 : i32, i32
  }
  func.func @transform_4(%arg0: i32, %arg1: i32) -> (i32, i32) {
    %c0_i32 = arith.constant 0 : i32
    %c0_i32_0 = arith.constant 0 : i32
    return %c0_i32, %arg1 : i32, i32
  }
  func.func @transform_5(%arg0: i32, %arg1: i32) -> (i32, i32) {
    %c0_i32 = arith.constant 0 : i32
    %c0_i32_0 = arith.constant 0 : i32
    return %c0_i32, %arg1 : i32, i32
  }
  func.func @transform_6(%arg0: i32, %arg1: i32) -> (i32, i32) {
    %c0_i32 = arith.constant 0 : i32
    return %arg0, %arg1 : i32, i32
  }
  func.func @transform_7(%arg0: i32, %arg1: i32) -> (i32, i32) {
    %c0_i32 = arith.constant 0 : i32
    return %arg0, %arg1 : i32, i32
  }
}

</mosaic_0001>

<llo_original>
// kernel: tpu_custom_call.1
$region0: #{tpu_custom_call.1}
  #allocation0 [shape = 'u32[]', space=smem, size = 0x4, offset = 0x4, fixed_abs, tag = 'smem constant byte address 0x4 - core index']
  #allocation1 [shape = 'u32[144,128]{1,0:T(1,128)}', space=vmem, size = 0x12000, scoped, tag = 'internal scratch']
  %s0 = inlined_call_operand.vmem [shape: bf16[8,16], index: 0, kind: input, shape index: {}]
  %s1 = inlined_call_operand.vmem [shape: bf16[8,128], index: 1, kind: input, shape index: {}]
  %s2 = inlined_call_operand.hbm [shape: f32[8,128], index: 2, kind: input, shape index: {}, may-alias: {2,7}]
  %s3 = inlined_call_operand.hbm [shape: bf16[16,512], index: 3, kind: input, shape index: {}]
  %s4 = inlined_call_operand.hbm [shape: bf16[128,512], index: 4, kind: input, shape index: {}]
  %s5 = inlined_call_operand.vmem [shape: f32[1,512], index: 5, kind: input, shape index: {}]
  %s6 = inlined_call_operand.hbm [shape: bf16[8,128], index: 6, kind: output, shape index: {0}]
  %s7 = inlined_call_operand.hbm [shape: f32[8,128], index: 7, kind: output, shape index: {1}, may-alias: {2,7}]
  %8 = xla_tuple %s6, %s7
  %s9 = sld [smem:[#allocation0]]
  $region54: #{tpu_custom_call.1} parent=0
    _
  %s11 = ssub.s32 1, %s9
  %s12 = scalar_select 0, %s11, %s9
  $region1: #{tpu_custom_call.1} parent=0
    #allocation2 [shape = 'u8[4096]{0}', space=vmem, size = 0x1000, scoped, tag = 'input window, operand 2, single buffered']
    #allocation3 [shape = 's32[1]{0}', space=sflag, size = 0x4, scoped, tag = 'scoped memory for tpu_custom_call.1']
    #allocation4 [shape = 's32[1]{0}', space=sflag, size = 0x4, scoped, tag = 'scoped memory for tpu_custom_call.1']
    #allocation5 [shape = 'u8[16384]{0}', space=vmem, size = 0x4000, scoped, tag = 'input window, operand 3, single buffered']
    #allocation6 [shape = 's32[1]{0}', space=sflag, size = 0x4, scoped, tag = 'scoped memory for tpu_custom_call.1']
    #allocation7 [shape = 'u8[131072]{0}', space=vmem, size = 0x20000, scoped, tag = 'input window, operand 4, single buffered']
    #allocation8 [shape = 'u8[2048]{0}', space=vmem, size = 0x800, scoped, tag = 'output window, operand 0, single buffered']
    #allocation9 [shape = 'u8[4096]{0}', space=vmem, size = 0x1000, scoped, tag = 'output window, operand 1, single buffered']
    #allocation10 [shape = 's32[1]{0}', space=sflag, size = 0x4, scoped, tag = 'scoped memory for tpu_custom_call.1']
    %13 = vsyncpa [#allocation3], 0
    %14 = vsyncpa [#allocation6], 0
    %15 = vsyncpa [#allocation4], 0
    %16 = vsyncpa [#allocation10], 0
    // Predicated region
    $region2: #{tpu_custom_call.1} parent=1 // pred_check
      _
    $region3: #{tpu_custom_call.1} parent=1 // pred_check_branch
      %18 = sbr.rel (0) target = $region5
    $region4: #{tpu_custom_call.1} parent=1 // pred_region
      _
    $region5: #{tpu_custom_call.1} parent=1 // pred_fallthru
      _
    // Predicated region
    $region6: #{tpu_custom_call.1} parent=1 // pred_check
      _
    $region7: #{tpu_custom_call.1} parent=1 // pred_check_branch
      %20 = sbr.rel (0) target = $region9
    $region8: #{tpu_custom_call.1} parent=1 // pred_region
      _
    $region9: #{tpu_custom_call.1} parent=1 // pred_fallthru
      _
    // Predicated region
    $region10: #{tpu_custom_call.1} parent=1 // pred_check
      _
    $region11: #{tpu_custom_call.1} parent=1 // pred_check_branch
      %22 = sbr.rel (0) target = $region13
    $region12: #{tpu_custom_call.1} parent=1 // pred_region
      %s24 = ssub.s32 128, 128
      %25 = vsyncadd [#allocation3], %s24
      %s27 = sshll.u32 [#allocation2], 4
      %s28 = int_to_ptr.vmem [resolvable:$true] %s27
      %30 = dma.hbm_to_vmem [thread:$0]  %s2, 128, %s28, [#allocation3]
    $region13: #{tpu_custom_call.1} parent=1 // pred_fallthru
      _
    // Predicated region
    $region14: #{tpu_custom_call.1} parent=1 // pred_check
      _
    $region15: #{tpu_custom_call.1} parent=1 // pred_check_branch
      %32 = sbr.rel (0) target = $region17
    $region16: #{tpu_custom_call.1} parent=1 // pred_region
      %s34 = ssub.s32 512, 512
      %35 = vsyncadd [#allocation6], %s34
      %s36 = sshll.u32 [#allocation5], 4
      %s37 = int_to_ptr.vmem [resolvable:$true] %s36
      %42 = dma.hbm_to_vmem [thread:$0]  %s3, 512, %s37, [#allocation6], 256, 256, 16
    $region17: #{tpu_custom_call.1} parent=1 // pred_fallthru
      _
    // Predicated region
    $region18: #{tpu_custom_call.1} parent=1 // pred_check
      _
    $region19: #{tpu_custom_call.1} parent=1 // pred_check_branch
      %44 = sbr.rel (0) target = $region21
    $region20: #{tpu_custom_call.1} parent=1 // pred_region
      %s46 = ssub.s32 4096, 4096
      %47 = vsyncadd [#allocation6], %s46
      %s48 = sshll.u32 [#allocation7], 4
      %s49 = int_to_ptr.vmem [resolvable:$true] %s48
      %54 = dma.hbm_to_vmem [thread:$0]  %s4, 4096, %s49, [#allocation6], 256, 256, 16
    $region21: #{tpu_custom_call.1} parent=1 // pred_fallthru
      _
    // Predicated region
    $region22: #{tpu_custom_call.1} parent=1 // pred_check
      _
    $region23: #{tpu_custom_call.1} parent=1 // pred_check_branch
      %56 = sbr.rel (0) target = $region25
    $region24: #{tpu_custom_call.1} parent=1 // pred_region
      _
    $region25: #{tpu_custom_call.1} parent=1 // pred_fallthru
      _
    // Predicated region
    $region26: #{tpu_custom_call.1} parent=1 // pred_check
      _
    $region27: #{tpu_custom_call.1} parent=1 // pred_check_branch
      %58 = sbr.rel (0) target = $region29
    $region28: #{tpu_custom_call.1} parent=1 // pred_region
      %59 = dma.done [#allocation3], 128
    $region29: #{tpu_custom_call.1} parent=1 // pred_fallthru
      _
    // Predicated region
    $region30: #{tpu_custom_call.1} parent=1 // pred_check
      _
    $region31: #{tpu_custom_call.1} parent=1 // pred_check_branch
      %61 = sbr.rel (0) target = $region33
    $region32: #{tpu_custom_call.1} parent=1 // pred_region
      %62 = dma.done [#allocation6], 512
    $region33: #{tpu_custom_call.1} parent=1 // pred_fallthru
      _
    // Predicated region
    $region34: #{tpu_custom_call.1} parent=1 // pred_check
      _
    $region35: #{tpu_custom_call.1} parent=1 // pred_check_branch
      %64 = sbr.rel (0) target = $region37
    $region36: #{tpu_custom_call.1} parent=1 // pred_region
      %65 = dma.done [#allocation6], 4096
    $region37: #{tpu_custom_call.1} parent=1 // pred_fallthru
      _
    %v67 = vld [vmem:[%s0] sm:$0xf]
    %v68 = vld [vmem:[#allocation5] sm:$0xff]
    %v69 = vld [vmem:[#allocation5 + $0x8] sm:$0xff]
    %v70 = vld [vmem:[#allocation5 + $0x10] sm:$0xff]
    %v71 = vld [vmem:[#allocation5 + $0x18] sm:$0xff]
    %v72 = vld [vmem:[%s1] sm:$0xf]
    %v73 = vld [vmem:[#allocation7] sm:$0xff]
    %v74 = vld [vmem:[#allocation7 + $0x8] sm:$0xff]
    %v75 = vld [vmem:[#allocation7 + $0x10] sm:$0xff]
    %v76 = vld [vmem:[#allocation7 + $0x18] sm:$0xff]
    %v77 = vld [vmem:[#allocation7 + $0x20] sm:$0xff]
    %v78 = vld [vmem:[#allocation7 + $0x28] sm:$0xff]
    %v79 = vld [vmem:[#allocation7 + $0x30] sm:$0xff]
    %v80 = vld [vmem:[#allocation7 + $0x38] sm:$0xff]
    %v81 = vld [vmem:[#allocation7 + $0x40] sm:$0xff]
    %v82 = vld [vmem:[#allocation7 + $0x48] sm:$0xff]
    %v83 = vld [vmem:[#allocation7 + $0x50] sm:$0xff]
    %v84 = vld [vmem:[#allocation7 + $0x58] sm:$0xff]
    %v85 = vld [vmem:[#allocation7 + $0x60] sm:$0xff]
    %v86 = vld [vmem:[#allocation7 + $0x68] sm:$0xff]
    %v87 = vld [vmem:[#allocation7 + $0x70] sm:$0xff]
    %v88 = vld [vmem:[#allocation7 + $0x78] sm:$0xff]
    %v89 = vld [vmem:[#allocation7 + $0x80] sm:$0xff]
    %v90 = vld [vmem:[#allocation7 + $0x88] sm:$0xff]
    %v91 = vld [vmem:[#allocation7 + $0x90] sm:$0xff]
    %v92 = vld [vmem:[#allocation7 + $0x98] sm:$0xff]
    %v93 = vld [vmem:[#allocation7 + $0xa0] sm:$0xff]
    %v94 = vld [vmem:[#allocation7 + $0xa8] sm:$0xff]
    %v95 = vld [vmem:[#allocation7 + $0xb0] sm:$0xff]
    %v96 = vld [vmem:[#allocation7 + $0xb8] sm:$0xff]
    %v97 = vld [vmem:[#allocation7 + $0xc0] sm:$0xff]
    %v98 = vld [vmem:[#allocation7 + $0xc8] sm:$0xff]
    %v99 = vld [vmem:[#allocation7 + $0xd0] sm:$0xff]
    %v100 = vld [vmem:[#allocation7 + $0xd8] sm:$0xff]
    %v101 = vld [vmem:[#allocation7 + $0xe0] sm:$0xff]
    %v102 = vld [vmem:[#allocation7 + $0xe8] sm:$0xff]
    %v103 = vld [vmem:[#allocation7 + $0xf0] sm:$0xff]
    %v104 = vld [vmem:[#allocation7 + $0xf8] sm:$0xff]
    %v137 = vunpack.c.l.b16 %v73
    %v138 = vunpack.c.h.b16 %v73
    %v139 = vunpack.c.l.b16 %v74
    %v140 = vunpack.c.h.b16 %v74
    %v141 = vunpack.c.l.b16 %v75
    %v142 = vunpack.c.h.b16 %v75
    %v143 = vunpack.c.l.b16 %v76
    %v144 = vunpack.c.h.b16 %v76
    %v145 = vunpack.c.l.b16 %v77
    %v146 = vunpack.c.h.b16 %v77
    %v147 = vunpack.c.l.b16 %v78
    %v148 = vunpack.c.h.b16 %v78
    %v149 = vunpack.c.l.b16 %v79
    %v150 = vunpack.c.h.b16 %v79
    %v151 = vunpack.c.l.b16 %v80
    %v152 = vunpack.c.h.b16 %v80
    %v153 = vunpack.c.l.b16 %v81
    %v154 = vunpack.c.h.b16 %v81
    %v155 = vunpack.c.l.b16 %v82
    %v156 = vunpack.c.h.b16 %v82
    %v157 = vunpack.c.l.b16 %v83
    %v158 = vunpack.c.h.b16 %v83
    %v159 = vunpack.c.l.b16 %v84
    %v160 = vunpack.c.h.b16 %v84
    %v161 = vunpack.c.l.b16 %v85
    %v162 = vunpack.c.h.b16 %v85
    %v163 = vunpack.c.l.b16 %v86
    %v164 = vunpack.c.h.b16 %v86
    %v165 = vunpack.c.l.b16 %v87
    %v166 = vunpack.c.h.b16 %v87
    %v167 = vunpack.c.l.b16 %v88
    %v168 = vunpack.c.h.b16 %v88
    %v169 = vunpack.c.l.b16 %v89
    %v170 = vunpack.c.h.b16 %v89
    %v171 = vunpack.c.l.b16 %v90
    %v172 = vunpack.c.h.b16 %v90
    %v173 = vunpack.c.l.b16 %v91
    %v174 = vunpack.c.h.b16 %v91
    %v175 = vunpack.c.l.b16 %v92
    %v176 = vunpack.c.h.b16 %v92
    %v177 = vunpack.c.l.b16 %v93
    %v178 = vunpack.c.h.b16 %v93
    %v179 = vunpack.c.l.b16 %v94
    %v180 = vunpack.c.h.b16 %v94
    %v181 = vunpack.c.l.b16 %v95
    %v182 = vunpack.c.h.b16 %v95
    %v183 = vunpack.c.l.b16 %v96
    %v184 = vunpack.c.h.b16 %v96
    %v185 = vunpack.c.l.b16 %v97
    %v186 = vunpack.c.h.b16 %v97
    %v187 = vunpack.c.l.b16 %v98
    %v188 = vunpack.c.h.b16 %v98
    %v189 = vunpack.c.l.b16 %v99
    %v190 = vunpack.c.h.b16 %v99
    %v191 = vunpack.c.l.b16 %v100
    %v192 = vunpack.c.h.b16 %v100
    %v193 = vunpack.c.l.b16 %v101
    %v194 = vunpack.c.h.b16 %v101
    %v195 = vunpack.c.l.b16 %v102
    %v196 = vunpack.c.h.b16 %v102
    %v197 = vunpack.c.l.b16 %v103
    %v198 = vunpack.c.h.b16 %v103
    %v199 = vunpack.c.l.b16 %v104
    %v200 = vunpack.c.h.b16 %v104
    %v201 = vpack.c.b16 %v141, %v137
    %v202 = vpack.c.b16 %v142, %v138
    %v203 = vpack.c.b16 %v143, %v139
    %v204 = vpack.c.b16 %v144, %v140
    %v205 = vpack.c.b16 %v149, %v145
    %v206 = vpack.c.b16 %v150, %v146
    %v207 = vpack.c.b16 %v151, %v147
    %v208 = vpack.c.b16 %v152, %v148
    %v209 = vpack.c.b16 %v157, %v153
    %v210 = vpack.c.b16 %v158, %v154
    %v211 = vpack.c.b16 %v159, %v155
    %v212 = vpack.c.b16 %v160, %v156
    %v213 = vpack.c.b16 %v165, %v161
    %v214 = vpack.c.b16 %v166, %v162
    %v215 = vpack.c.b16 %v167, %v163
    %v216 = vpack.c.b16 %v168, %v164
    %v217 = vpack.c.b16 %v173, %v169
    %v218 = vpack.c.b16 %v174, %v170
    %v219 = vpack.c.b16 %v175, %v171
    %v220 = vpack.c.b16 %v176, %v172
    %v221 = vpack.c.b16 %v181, %v177
    %v222 = vpack.c.b16 %v182, %v178
    %v223 = vpack.c.b16 %v183, %v179
    %v224 = vpack.c.b16 %v184, %v180
    %v225 = vpack.c.b16 %v189, %v185
    %v226 = vpack.c.b16 %v190, %v186
    %v227 = vpack.c.b16 %v191, %v187
    %v228 = vpack.c.b16 %v192, %v188
    %v229 = vpack.c.b16 %v197, %v193
    %v230 = vpack.c.b16 %v198, %v194
    %v231 = vpack.c.b16 %v199, %v195
    %v232 = vpack.c.b16 %v200, %v196
    %265 = vmatprep.subr.bf16.mxu0 %v230
    %266 = vmatpush1.bf16.msra.mxu0 %v229
    %267 = vmatprep.subr.bf16.mxu0 %v226
    %268 = vmatpush1.bf16.msra.mxu0 %v225
    %269 = vmatprep.subr.bf16.mxu0 %v222
    %270 = vmatpush1.bf16.msra.mxu0 %v221
    %271 = vmatprep.subr.bf16.mxu0 %v218
    %272 = vmatpush1.bf16.msra.mxu0 %v217
    %273 = vmatprep.subr.bf16.mxu0 %v214
    %274 = vmatpush1.bf16.msra.mxu0 %v213
    %275 = vmatprep.subr.bf16.mxu0 %v210
    %276 = vmatpush1.bf16.msra.mxu0 %v209
    %277 = vmatprep.subr.bf16.mxu0 %v206
    %278 = vmatpush1.bf16.msra.mxu0 %v205
    %279 = vmatprep.subr.bf16.mxu0 %v202
    %280 = vmatpush1.bf16.msra.mxu0 %v201
    %281 = vmatprep.subr.bf16.mxu0 0
    %282 = vmatpush2.bf16.msra.mxu0 0
    %283 = vmatprep.subr.bf16.mxu0 0
    %284 = vmatpush2.bf16.msra.mxu0 0
    %285 = vmatprep.subr.bf16.mxu0 0
    %286 = vmatpush2.bf16.msra.mxu0 0
    %287 = vmatprep.subr.bf16.mxu0 0
    %288 = vmatpush2.bf16.msra.mxu0 0
    %289 = vmatprep.subr.bf16.mxu0 0
    %290 = vmatpush2.bf16.msra.mxu0 0
    %291 = vmatprep.subr.bf16.mxu0 0
    %292 = vmatpush2.bf16.msra.mxu0 0
    %293 = vmatprep.subr.bf16.mxu0 0
    %294 = vmatpush2.bf16.msra.mxu0 0
    %295 = vmatprep.subr.bf16.mxu0 0
    %296 = vmatpush2.bf16.msra.mxu0 0
    %297 = vmatprep.mubr.bf16.mxu0 0
    %298 = vmatmul.mubr.bf16.gmra.mxu0 %v72
    %v299 = vpop.f32.mrf.mxu0
    %v300 = vadd.f32 0.0, %v299
    %v301 = vpop.f32.mrf.mxu0
    %v302 = vadd.f32 0.0, %v301
    %v303 = vpop.f32.mrf.mxu0
    %v304 = vpop.f32.mrf.mxu0
    %305 = vdwg.mxu0
    %306 = vmatprep.subr.bf16.mxu0 %v232
    %307 = vmatpush1.bf16.msra.mxu0 %v231
    %308 = vmatprep.subr.bf16.mxu0 %v228
    %309 = vmatpush1.bf16.msra.mxu0 %v227
    %310 = vmatprep.subr.bf16.mxu0 %v224
    %311 = vmatpush1.bf16.msra.mxu0 %v223
    %312 = vmatprep.subr.bf16.mxu0 %v220
    %313 = vmatpush1.bf16.msra.mxu0 %v219
    %314 = vmatprep.subr.bf16.mxu0 %v216
    %315 = vmatpush1.bf16.msra.mxu0 %v215
    %316 = vmatprep.subr.bf16.mxu0 %v212
    %317 = vmatpush1.bf16.msra.mxu0 %v211
    %318 = vmatprep.subr.bf16.mxu0 %v208
    %319 = vmatpush1.bf16.msra.mxu0 %v207
    %320 = vmatprep.subr.bf16.mxu0 %v204
    %321 = vmatpush1.bf16.msra.mxu0 %v203
    %322 = vmatprep.subr.bf16.mxu0 0
    %323 = vmatpush2.bf16.msra.mxu0 0
    %324 = vmatprep.subr.bf16.mxu0 0
    %325 = vmatpush2.bf16.msra.mxu0 0
    %326 = vmatprep.subr.bf16.mxu0 0
    %327 = vmatpush2.bf16.msra.mxu0 0
    %328 = vmatprep.subr.bf16.mxu0 0
    %329 = vmatpush2.bf16.msra.mxu0 0
    %330 = vmatprep.subr.bf16.mxu0 0
    %331 = vmatpush2.bf16.msra.mxu0 0
    %332 = vmatprep.subr.bf16.mxu0 0
    %333 = vmatpush2.bf16.msra.mxu0 0
    %334 = vmatprep.subr.bf16.mxu0 0
    %335 = vmatpush2.bf16.msra.mxu0 0
    %336 = vmatprep.subr.bf16.mxu0 0
    %337 = vmatpush2.bf16.msra.mxu0 0
    %338 = vmatprep.mubr.bf16.mxu0 0
    %339 = vmatmul.mubr.bf16.gmra.mxu0 %v72
    %v340 = vpop.f32.mrf.mxu0
    %v341 = vadd.f32 0.0, %v340
    %v342 = vpop.f32.mrf.mxu0
    %v343 = vadd.f32 0.0, %v342
    %v344 = vpop.f32.mrf.mxu0
    %v345 = vpop.f32.mrf.mxu0
    %346 = vdwg.mxu0
    %v351 = vunpack.c.l.b16 %v68
    %v352 = vunpack.c.h.b16 %v68
    %v353 = vunpack.c.l.b16 %v69
    %v354 = vunpack.c.h.b16 %v69
    %v355 = vunpack.c.l.b16 %v70
    %v356 = vunpack.c.h.b16 %v70
    %v357 = vunpack.c.l.b16 %v71
    %v358 = vunpack.c.h.b16 %v71
    %v359 = vpack.c.b16 %v355, %v351
    %v360 = vpack.c.b16 %v356, %v352
    %v361 = vpack.c.b16 %v357, %v353
    %v362 = vpack.c.b16 %v358, %v354
    %vm367 = vcmask 130048
    %v369 = vsel %vm367, %v67, 0
    %371 = vmatprep.subr.bf16.mxu0 0
    %372 = vmatpush1.bf16.msra.mxu0 0
    %373 = vmatprep.subr.bf16.mxu0 0
    %374 = vmatpush1.bf16.msra.mxu0 0
    %375 = vmatprep.subr.bf16.mxu0 0
    %376 = vmatpush1.bf16.msra.mxu0 0
    %377 = vmatprep.subr.bf16.mxu0 0
    %378 = vmatpush1.bf16.msra.mxu0 0
    %379 = vmatprep.subr.bf16.mxu0 0
    %380 = vmatpush1.bf16.msra.mxu0 0
    %381 = vmatprep.subr.bf16.mxu0 0
    %382 = vmatpush1.bf16.msra.mxu0 0
    %383 = vmatprep.subr.bf16.mxu0 0
    %384 = vmatpush1.bf16.msra.mxu0 0
    %385 = vmatprep.subr.bf16.mxu0 %v360
    %386 = vmatpush1.bf16.msra.mxu0 %v359
    %387 = vmatprep.subr.bf16.mxu0 0
    %388 = vmatpush2.bf16.msra.mxu0 0
    %389 = vmatprep.subr.bf16.mxu0 0
    %390 = vmatpush2.bf16.msra.mxu0 0
    %391 = vmatprep.subr.bf16.mxu0 0
    %392 = vmatpush2.bf16.msra.mxu0 0
    %393 = vmatprep.subr.bf16.mxu0 0
    %394 = vmatpush2.bf16.msra.mxu0 0
    %395 = vmatprep.subr.bf16.mxu0 0
    %396 = vmatpush2.bf16.msra.mxu0 0
    %397 = vmatprep.subr.bf16.mxu0 0
    %398 = vmatpush2.bf16.msra.mxu0 0
    %399 = vmatprep.subr.bf16.mxu0 0
    %400 = vmatpush2.bf16.msra.mxu0 0
    %401 = vmatprep.subr.bf16.mxu0 0
    %402 = vmatpush2.bf16.msra.mxu0 0
    %403 = vmatprep.mubr.bf16.mxu0 0
    %404 = vmatmul.mubr.bf16.gmra.mxu0 %v369
    %v405 = vpop.f32.mrf.mxu0
    %v406 = vadd.f32 %v300, %v405
    %v407 = vpop.f32.mrf.mxu0
    %v408 = vadd.f32 %v302, %v407
    %v409 = vpop.f32.mrf.mxu0
    %v410 = vpop.f32.mrf.mxu0
    %411 = vdwg.mxu0
    %412 = vmatprep.subr.bf16.mxu0 0
    %413 = vmatpush1.bf16.msra.mxu0 0
    %414 = vmatprep.subr.bf16.mxu0 0
    %415 = vmatpush1.bf16.msra.mxu0 0
    %416 = vmatprep.subr.bf16.mxu0 0
    %417 = vmatpush1.bf16.msra.mxu0 0
    %418 = vmatprep.subr.bf16.mxu0 0
    %419 = vmatpush1.bf16.msra.mxu0 0
    %420 = vmatprep.subr.bf16.mxu0 0
    %421 = vmatpush1.bf16.msra.mxu0 0
    %422 = vmatprep.subr.bf16.mxu0 0
    %423 = vmatpush1.bf16.msra.mxu0 0
    %424 = vmatprep.subr.bf16.mxu0 0
    %425 = vmatpush1.bf16.msra.mxu0 0
    %426 = vmatprep.subr.bf16.mxu0 %v362
    %427 = vmatpush1.bf16.msra.mxu0 %v361
    %428 = vmatprep.subr.bf16.mxu0 0
    %429 = vmatpush2.bf16.msra.mxu0 0
    %430 = vmatprep.subr.bf16.mxu0 0
    %431 = vmatpush2.bf16.msra.mxu0 0
    %432 = vmatprep.subr.bf16.mxu0 0
    %433 = vmatpush2.bf16.msra.mxu0 0
    %434 = vmatprep.subr.bf16.mxu0 0
    %435 = vmatpush2.bf16.msra.mxu0 0
    %436 = vmatprep.subr.bf16.mxu0 0
    %437 = vmatpush2.bf16.msra.mxu0 0
    %438 = vmatprep.subr.bf16.mxu0 0
    %439 = vmatpush2.bf16.msra.mxu0 0
    %440 = vmatprep.subr.bf16.mxu0 0
    %441 = vmatpush2.bf16.msra.mxu0 0
    %442 = vmatprep.subr.bf16.mxu0 0
    %443 = vmatpush2.bf16.msra.mxu0 0
    %444 = vmatprep.mubr.bf16.mxu0 0
    %445 = vmatmul.mubr.bf16.gmra.mxu0 %v369
    %v446 = vpop.f32.mrf.mxu0
    %v447 = vadd.f32 %v341, %v446
    %v448 = vpop.f32.mrf.mxu0
    %v449 = vadd.f32 %v343, %v448
    %v450 = vpop.f32.mrf.mxu0
    %v451 = vpop.f32.mrf.mxu0
    %452 = vdwg.mxu0
    %v453 = vld [vmem:[%s5] sm:$0xf]
    %v455 = vlaneseq
    %v456 = vshrl.u32 %v455, 7
    %v457 = vsub.s32 0, %v456
    %v458 = vrot.slane %v453, %v457
    %v459 = vlaneseq
    %v460 = vshrl.u32 %v459, 7
    %v461 = vsub.s32 1, %v460
    %v462 = vrot.slane %v453, %v461
    %v463 = vlaneseq
    %v464 = vshrl.u32 %v463, 7
    %v465 = vsub.s32 2, %v464
    %v466 = vrot.slane %v453, %v465
    %v467 = vlaneseq
    %v468 = vshrl.u32 %v467, 7
    %v469 = vsub.s32 3, %v468
    %v470 = vrot.slane %v453, %v469
    %v475 = vadd.f32 %v406, %v458
    %v476 = vadd.f32 %v408, %v462
    %v477 = vadd.f32 %v447, %v466
    %v478 = vadd.f32 %v449, %v470
    %v479 = vmul.f32 %v475, 0.5
    %v480 = vtanh.pop %v479
    %v481 = vmul.f32 %v480, 0.5
    %v482 = vadd.f32 %v481, 0.5
    %v483 = vmul.f32 %v476, 0.5
    %v484 = vtanh.pop %v483
    %v485 = vmul.f32 %v484, 0.5
    %v486 = vadd.f32 %v485, 0.5
    %v487 = vtanh.pop %v477
    %v488 = vmul.f32 %v478, 0.5
    %v489 = vtanh.pop %v488
    %v490 = vmul.f32 %v489, 0.5
    %v491 = vadd.f32 %v490, 0.5
    %v492 = vld [vmem:[#allocation2] sm:$0xff]
    %v493 = vmul.f32 %v492, %v486
    %v494 = vmul.f32 %v482, %v487
    %v495 = vadd.f32 %v493, %v494
    %v496 = vtanh.pop %v495
    %v497 = vmul.f32 %v491, %v496
    %v498 = vpack.c.bf16 %v497, %v497
    %499 = vst [vmem:[#allocation8] sm:$0xf] %v498
    %500 = vst [vmem:[#allocation9] sm:$0xff] %v495
    // Predicated region
    $region38: #{tpu_custom_call.1} parent=1 // pred_check
      _
    $region39: #{tpu_custom_call.1} parent=1 // pred_check_branch
      %502 = sbr.rel (0) target = $region41
    $region40: #{tpu_custom_call.1} parent=1 // pred_region
      %s504 = ssub.s32 64, 64
      %505 = vsyncadd [#allocation4], %s504
      %s507 = sshll.u32 [#allocation8], 4
      %s508 = int_to_ptr.vmem [resolvable:$true] %s507
      %510 = dma.vmem_to_hbm [thread:$0]  %s508, 64, %s6, [#allocation4]
    $region41: #{tpu_custom_call.1} parent=1 // pred_fallthru
      _
    // Predicated region
    $region42: #{tpu_custom_call.1} parent=1 // pred_check
      _
    $region43: #{tpu_custom_call.1} parent=1 // pred_check_branch
      %512 = sbr.rel (0) target = $region45
    $region44: #{tpu_custom_call.1} parent=1 // pred_region
      %s514 = ssub.s32 128, 128
      %515 = vsyncadd [#allocation10], %s514
      %s517 = sshll.u32 [#allocation9], 4
      %s518 = int_to_ptr.vmem [resolvable:$true] %s517
      %520 = dma.vmem_to_hbm [thread:$0]  %s518, 128, %s7, [#allocation10]
    $region45: #{tpu_custom_call.1} parent=1 // pred_fallthru
      _
    // Predicated region
    $region46: #{tpu_custom_call.1} parent=1 // pred_check
      _
    $region47: #{tpu_custom_call.1} parent=1 // pred_check_branch
      %522 = sbr.rel (0) target = $region49
    $region48: #{tpu_custom_call.1} parent=1 // pred_region
      %523 = dma.done [#allocation4], 64
    $region49: #{tpu_custom_call.1} parent=1 // pred_fallthru
      _
    // Predicated region
    $region50: #{tpu_custom_call.1} parent=1 // pred_check
      _
    $region51: #{tpu_custom_call.1} parent=1 // pred_check_branch
      %525 = sbr.rel (0) target = $region53
    $region52: #{tpu_custom_call.1} parent=1 // pred_region
      %526 = dma.done [#allocation10], 128
    $region53: #{tpu_custom_call.1} parent=1 // pred_fallthru
      _
    %527 = vsyncpa [#allocation3], 1
    %528 = vsyncpa [#allocation6], 1
    %529 = vsyncpa [#allocation4], 1
    %530 = vsyncpa [#allocation10], 1

</llo_original>
